<compile_context>
chip_gen: v5e
topology: v5e:2x2
jax: 0.10.0
libtpu: 0.0.40
codegen_flags: <defaults>
</compile_context>

<pallas_src>
import jax
import jax.numpy as jnp
from jax.experimental import pallas as pl
from jax.experimental.pallas import tpu as pltpu


# ----------------------------------------------------------------------------
# Small helpers
# ----------------------------------------------------------------------------
def _cdiv(a: int, b: int) -> int:
    return -(-a // b)


def _ceil_to(x: int, m: int) -> int:
    return _cdiv(x, m) * m


def _padded_block_bytes(shape, itemsize: int = 4) -> int:
    """VMEM footprint of one block, including sublane(8)/lane(128) padding."""
    dims = list(shape)
    dims[-1] = _ceil_to(dims[-1], 128)
    if len(dims) >= 2:
        dims[-2] = _ceil_to(dims[-2], 8)
    n = 1
    for d in dims:
        n *= d
    return n * itemsize


def _vmem_budget_and_limit():
    """(operand budget bytes, vmem_limit_bytes to request) sized from HW info."""
    try:
        cap = int(getattr(pltpu.get_tpu_info(), "vmem_capacity_bytes", 0))
    except Exception:  # pragma: no cover - interpret mode / older runtimes
        cap = 0
    if cap <= 0:
        cap = 64 << 20          # v7x per-TensorCore VMEM (smallest generation)
    # Request the scoped limit explicitly (the v5e default is only 16 MiB) but
    # stay well under physical VMEM; keep headroom for compiler scratch.
    limit = max(32 << 20, min(3 * cap // 4, 96 << 20))
    budget = max(16 << 20, limit - (8 << 20))
    return budget, limit


def _choose_tile(bc: int, row_bytes: int, const_bytes: int, budget: int) -> int:
    """Plane-batch tile size.

    * Largest tile whose double-buffered I/O blocks plus the (double-buffered)
      constant operands fit the VMEM budget (lane/sublane padding included).
    * bc <= max_tile -> one full-extent block (no padding, no masking).
    * Otherwise round the step count up to an even number so a 2-TensorCore
      chip (v7x) splits evenly; single-TC chips just see near-maximal blocks.
    """
    avail = max(budget - 2 * const_bytes, 2 * row_bytes * 8)
    max_tile = (avail // (2 * row_bytes)) // 8 * 8
    max_tile = int(max(8, min(1024, max_tile)))
    if bc <= max_tile:
        return bc
    steps = _cdiv(bc, max_tile)
    if steps % 2:
        steps += 1                       # even split across the two TCs on v7x
    tile = _ceil_to(_cdiv(bc, steps), 8)
    return int(min(tile, max_tile))


# ----------------------------------------------------------------------------
# Interpolation matrices (PyTorch bilinear, align_corners=True)
# ----------------------------------------------------------------------------
def _interp_matrix(out_size: int, in_size: int) -> jnp.ndarray:
    """PyTorch bilinear, align_corners=True interpolation matrix (out, in)."""
    if in_size == 1:
        return jnp.ones((out_size, 1), jnp.float32)
    src = jnp.arange(out_size, dtype=jnp.float32) * (in_size - 1) / (out_size - 1)
    lo = jnp.clip(jnp.floor(src).astype(jnp.int32), 0, in_size - 2)
    frac = src - lo.astype(jnp.float32)
    rows = jnp.arange(out_size)
    m = jnp.zeros((out_size, in_size), jnp.float32)
    m = m.at[rows, lo].add(1.0 - frac)
    m = m.at[rows, lo + 1].add(frac)
    return m


# ----------------------------------------------------------------------------
# Pallas kernels
# ----------------------------------------------------------------------------
def _upsample_kron_kernel(x_ref, kt_ref, o_ref):
    # x_ref : (TILE_BC, H*W)    flattened planes (partial last block is masked)
    # kt_ref: (H*W, Ho*Wo)      kron(Uh, Uw)^T, constant across the grid
    # o_ref : (TILE_BC, Ho*Wo)  lane-dense output
    o_ref[...] = jnp.dot(
        x_ref[...], kt_ref[...], preferred_element_type=jnp.float32
    ).astype(o_ref.dtype)


def _upsample_sep_kernel(x_ref, uh_ref, uwt_ref, o_ref):
    # Separable form for large feature maps.
    # x_ref  : (TILE_BC, H, W)
    # uh_ref : (Ho, H)
    # uwt_ref: (W, Wo)   pre-transposed on host (no in-kernel .T)
    # o_ref  : (TILE_BC, Ho, Wo)
    tbc, H, W = x_ref.shape
    Wo = uwt_ref.shape[1]
    # W-contraction: fold (TILE_BC, H) into one M dim -> single lane-dense matmul.
    t = jnp.dot(
        x_ref[...].reshape(tbc * H, W), uwt_ref[...],
        preferred_element_type=jnp.float32,
    ).reshape(tbc, H, Wo)
    # H-contraction as a batched contraction over the plane batch.
    # TODO(synk): if this ever becomes MXU-bound, fold the batch into M via
    # two XLU transposes and one (tbc*Wo, H) @ (H, Ho) matmul.
    y = jnp.einsum("oh,bhw->bow", uh_ref[...], t,
                   preferred_element_type=jnp.float32)
    o_ref[...] = y.astype(o_ref.dtype)


# ----------------------------------------------------------------------------
# Bilinear x2 upsample, align_corners=True (NCHW)
# ----------------------------------------------------------------------------
def bilinear_upsample_x2(x: jnp.ndarray) -> jnp.ndarray:
    """x: (B, C, H, W) float32 NCHW -> (B, C, 2H, 2W), align_corners=True."""
    B, C, H, W = x.shape
    Ho, Wo = 2 * H, 2 * W
    BC = B * C
    uh = _interp_matrix(Ho, H)
    uw = _interp_matrix(Wo, W)
    dtype = x.dtype
    budget, vmem_limit = _vmem_budget_and_limit()

    if H * W <= 256:
        # --- Kronecker single-matmul form (small feature maps, the hot path) ---
        kt = jnp.einsum("oh,pw->hwop", uh, uw).reshape(H * W, Ho * Wo)
        const_bytes = _padded_block_bytes((H * W, Ho * Wo))
        row_bytes = (_ceil_to(H * W, 128) + _ceil_to(Ho * Wo, 128)) * 4
        tile = _choose_tile(BC, row_bytes, const_bytes, budget)
        steps = _cdiv(BC, tile)
        xf = x.reshape(BC, H * W)
        out = pl.pallas_call(
            _upsample_kron_kernel,
            out_shape=jax.ShapeDtypeStruct((BC, Ho * Wo), dtype),
            grid_spec=pltpu.PrefetchScalarGridSpec(
                num_scalar_prefetch=0,
                grid=(steps,),
                in_specs=[
                    pl.BlockSpec((tile, H * W), lambda i: (i, 0)),
                    pl.BlockSpec((H * W, Ho * Wo), lambda i: (0, 0)),
                ],
                out_specs=pl.BlockSpec((tile, Ho * Wo), lambda i: (i, 0)),
            ),
            compiler_params=pltpu.CompilerParams(
                dimension_semantics=("parallel",),
                vmem_limit_bytes=int(vmem_limit),
            ),
            cost_estimate=pl.CostEstimate(
                flops=2 * BC * (H * W) * (Ho * Wo),
                transcendentals=0,
                bytes_accessed=4 * (BC * H * W + BC * Ho * Wo + H * W * Ho * Wo),
            ),
        )(xf, kt)
        return out.reshape(B, C, Ho, Wo)

    # --- Batched separable form (large feature maps) ---
    # TODO(synk): for extremely large planes (spatial >~ 1024) an additional
    # spatial tiling would be needed to respect the VMEM budget.
    uwt = uw.T  # hoisted transpose (one-time, host side)
    const_bytes = _padded_block_bytes((Ho, H)) + _padded_block_bytes((W, Wo))
    row_bytes = (_ceil_to(H, 8) * _ceil_to(W, 128)
                 + _ceil_to(Ho, 8) * _ceil_to(Wo, 128)) * 4
    tile = _choose_tile(BC, row_bytes, const_bytes, budget)
    steps = _cdiv(BC, tile)
    xf = x.reshape(BC, H, W)
    out = pl.pallas_call(
        _upsample_sep_kernel,
        out_shape=jax.ShapeDtypeStruct((BC, Ho, Wo), dtype),
        grid_spec=pltpu.PrefetchScalarGridSpec(
            num_scalar_prefetch=0,
            grid=(steps,),
            in_specs=[
                pl.BlockSpec((tile, H, W), lambda i: (i, 0, 0)),
                pl.BlockSpec((Ho, H), lambda i: (0, 0)),
                pl.BlockSpec((W, Wo), lambda i: (0, 0)),
            ],
            out_specs=pl.BlockSpec((tile, Ho, Wo), lambda i: (i, 0, 0)),
        ),
        compiler_params=pltpu.CompilerParams(
            dimension_semantics=("parallel",),
            vmem_limit_bytes=int(vmem_limit),
        ),
        cost_estimate=pl.CostEstimate(
            flops=2 * BC * H * W * Wo + 2 * BC * Wo * H * Ho,
            transcendentals=0,
            bytes_accessed=4 * (BC * H * W + BC * Ho * Wo + Ho * H + W * Wo),
        ),
    )(xf, uh, uwt)
    return out.reshape(B, C, Ho, Wo)


# ----------------------------------------------------------------------------
# Deterministic stub for the wrapped backbone `self.model`
# (two_outputs / return_three => returns (h, p, skips))
# ----------------------------------------------------------------------------
# TODO(synk): the real backbone is an external constructor argument; replaced
# with a deterministic JAX stub producing tensors of the expected shapes.
def make_stub_params(key, pic_shape, img_size, c0):
    N, BS, Cin, Hp, Wp = pic_shape
    e = c0 * img_size * img_size
    k1, k2, k3, k4, k5 = jax.random.split(key, 5)
    return {
        "w_h": jax.random.normal(k1, (Cin * Hp * Wp, e), jnp.float32) * 0.02,
        "w_p": jax.random.normal(k2, (Cin * Hp * Wp, 10), jnp.float32) * 0.02,
        "w_s0": jax.random.normal(k3, (2, Cin), jnp.float32) * 0.1,
        "w_s1": jax.random.normal(k4, (3, Cin), jnp.float32) * 0.1,
        "w_s2": jax.random.normal(k5, (5, Cin), jnp.float32) * 0.1,
    }


def stub_model(pic_set, params):
    N, BS, Cin, Hp, Wp = pic_set.shape
    flat = pic_set.reshape(N, BS, -1)
    h = flat @ params["w_h"]                                  # (N, BS, E)
    p = flat @ params["w_p"]                                  # (N, BS, 10)
    x4 = pic_set.reshape(N * BS, Cin, Hp, Wp)
    skip0 = jnp.einsum("oc,bchw->bohw", params["w_s0"], x4)   # (N*BS, 2, Hp, Wp)
    skip1 = jnp.einsum("oc,bchw->bohw", params["w_s1"], x4)   # (N*BS, 3, Hp, Wp)
    pooled = x4.reshape(N * BS, Cin, Hp // 2, 2, Wp // 2, 2).mean(axis=(3, 5))
    skip2 = jnp.einsum("oc,bchw->bohw", params["w_s2"], pooled)  # (N*BS, 5, Hp/2, Wp/2)
    return h, p, [skip0, skip1, skip2]


# ----------------------------------------------------------------------------
# ClBlockEnc.forward
# ----------------------------------------------------------------------------
def cl_block_enc_forward(pic_set, params, img_size, d_model_attn):
    h, p, skips = stub_model(pic_set, params)
    N, BS, E = h.shape
    h = h.reshape(N, BS, -1, img_size, img_size)

    # Split skips[1:] into those already at img_size and those needing the x2
    # upsample.  The latter all share the same spatial size (img_size // 2,
    # since they are viewed as img_size afterwards) -> fuse them into a single
    # Pallas launch by concatenating channel dims.
    entries = []            # (needs_upsample, payload)
    to_up = []
    off = 0
    for skip in skips[1:]:
        if skip.shape[-1] != img_size:
            entries.append((True, (off, skip.shape[1])))
            to_up.append(skip)
            off += skip.shape[1]
        else:
            entries.append((False, skip))

    up = None
    if to_up:
        fused = to_up[0] if len(to_up) == 1 else jnp.concatenate(to_up, axis=1)
        up = bilinear_upsample_x2(fused)        # ONE pallas_call for all skips

    agg = [h]
    for needs_up, payload in entries:
        if needs_up:
            c_off, c = payload
            skip = up[:, c_off:c_off + c]
        else:
            skip = payload
        agg.append(skip.reshape(N, BS, -1, img_size, img_size))
    rep = jnp.concatenate(agg, axis=2)
    return rep[:, :, :d_model_attn]


if __name__ == "__main__":
    N, BS, Cin = 2, 2, 3          # set size, batch, input channels
    Hp = Wp = 16                  # input picture spatial size
    img_size = 16                 # target spatial size of the representation
    c0 = 2                        # channels encoded in h (E = c0 * img_size^2)
    d_model_attn = 8              # channel slice of the concatenated rep

    key = jax.random.PRNGKey(0)
    k_pic, k_params = jax.random.split(key)
    pic_set = jax.random.normal(k_pic, (N, BS, Cin, Hp, Wp), jnp.float32)
    params = make_stub_params(k_params, pic_set.shape, img_size, c0)

    rep = cl_block_enc_forward(pic_set, params, img_size, d_model_attn)
    rep = jax.block_until_ready(rep)
    assert rep.shape == (N, BS, d_model_attn, img_size, img_size), rep.shape

    # Correctness: Pallas bilinear x2 vs pure-JAX separable reference.
    _, _, skips = stub_model(pic_set, params)
    s2 = skips[2]                                            # (4, 5, 8, 8)
    uh = _interp_matrix(2 * s2.shape[2], s2.shape[2])
    uw = _interp_matrix(2 * s2.shape[3], s2.shape[3])
    ref_up = jnp.einsum("oh,bchw,pw->bcop", uh, s2, uw)
    got_up = jax.block_until_ready(bilinear_upsample_x2(s2))
    assert jnp.allclose(got_up, ref_up, atol=1e-5, rtol=1e-5)

    # Correctness: full forward vs a pure-JAX reference forward.
    h_ref = skips_h = None
    h_full, _, skips_ref = stub_model(pic_set, params)
    hr = h_full.reshape(N, BS, -1, img_size, img_size)
    s1r = skips_ref[1].reshape(N, BS, -1, img_size, img_size)
    s2r = ref_up.reshape(N, BS, -1, img_size, img_size)
    rep_ref = jnp.concatenate([hr, s1r, s2r], axis=2)[:, :, :d_model_attn]
    assert jnp.allclose(rep, rep_ref, atol=1e-5, rtol=1e-5)

    print("KERNEL_OK")
</pallas_src>

<mosaic_0001>
module attributes {stable_mosaic.version = 11 : i64} {
  func.func @_upsample_kron_kernel(%arg0: i32, %arg1: memref<20x64xf32, #tpu.memory_space<vmem>>, %arg2: memref<64x256xf32, #tpu.memory_space<vmem>>, %arg3: memref<20x256xf32, #tpu.memory_space<vmem>>) attributes {dimension_semantics = [#tpu.dimension_semantics<parallel>], iteration_bounds = array<i64: 1>, scalar_prefetch = 0 : i64, scratch_operands = 0 : i64, tpu.core_type = #tpu.core_type<tc>, window_params = [{transform_indices = @transform_0, window_bounds = array<i64: 20, 64>}, {pipeline_mode = #tpu.pipeline_mode<synchronous>, transform_indices = @transform_1, window_bounds = array<i64: 64, 256>}, {transform_indices = @transform_2, window_bounds = array<i64: 20, 256>}]} {
    %c0 = arith.constant 0 : index
    %c0_0 = arith.constant 0 : index
    %0 = vector.load %arg1[%c0, %c0_0] : memref<20x64xf32, #tpu.memory_space<vmem>>, vector<20x64xf32>
    %c0_1 = arith.constant 0 : index
    %c0_2 = arith.constant 0 : index
    %1 = vector.load %arg2[%c0_1, %c0_2] : memref<64x256xf32, #tpu.memory_space<vmem>>, vector<64x256xf32>
    %cst = arith.constant dense<0.000000e+00> : vector<20x256xf32>
    %2 = tpu.matmul %0, %1, %cst {dimension_numbers = #tpu.dot_dimension_numbers<[1], [0], [0], [1], [0, 0, 1, 1], [], []>} : vector<20x64xf32>, vector<64x256xf32>, vector<20x256xf32> -> vector<20x256xf32>
    %c0_3 = arith.constant 0 : index
    %c0_4 = arith.constant 0 : index
    %3 = vector.load %arg3[%c0_3, %c0_4] : memref<20x256xf32, #tpu.memory_space<vmem>>, vector<20x256xf32>
    tpu.vector_store %arg3[%c0_3, %c0_4], %2 {strides = array<i32>} : memref<20x256xf32, #tpu.memory_space<vmem>>, vector<20x256xf32>,
    return
  }
  func.func @transform_0(%arg0: i32) -> (i32, i32) {
    %c0_i32 = arith.constant 0 : i32
    %c0_i32_0 = arith.constant 0 : i32
    return %arg0, %c0_i32 : i32, i32
  }
  func.func @transform_1(%arg0: i32) -> (i32, i32) {
    %c0_i32 = arith.constant 0 : i32
    %c0_i32_0 = arith.constant 0 : i32
    %c0_i32_1 = arith.constant 0 : i32
    return %c0_i32, %c0_i32_0 : i32, i32
  }
  func.func @transform_2(%arg0: i32) -> (i32, i32) {
    %c0_i32 = arith.constant 0 : i32
    %c0_i32_0 = arith.constant 0 : i32
    return %arg0, %c0_i32 : i32, i32
  }
}

</mosaic_0001>

<llo_original>
// kernel: tpu_custom_call.1
$region0: #{tpu_custom_call.1}
  #allocation0 [shape = 'u32[]', space=smem, size = 0x4, offset = 0x4, fixed_abs, tag = 'smem constant byte address 0x4 - core index']
  #allocation1 [shape = 'u32[72,128]{1,0:T(1,128)}', space=vmem, size = 0x9000, scoped, tag = 'internal scratch']
  %s0 = inlined_call_operand.hbm [shape: f32[20,64], index: 0, kind: input, shape index: {}]
  %s1 = inlined_call_operand.hbm [shape: f32[64,256], index: 1, kind: input, shape index: {}]
  %s2 = inlined_call_operand.hbm [shape: f32[20,256], index: 2, kind: output, shape index: {}]
  %s3 = sld [smem:[#allocation0]]
  $region26: #{tpu_custom_call.1} parent=0
    _
  %s5 = ssub.s32 1, %s3
  %s6 = scalar_select 0, %s5, %s3
  $region1: #{tpu_custom_call.1} parent=0
    #allocation2 [shape = 'u8[12288]{0}', space=vmem, size = 0x3000, scoped, tag = 'input window, operand 0, single buffered']
    #allocation3 [shape = 's32[1]{0}', space=sflag, size = 0x4, scoped, tag = 'scoped memory for tpu_custom_call.1']
    #allocation4 [shape = 's32[1]{0}', space=sflag, size = 0x4, scoped, tag = 'scoped memory for tpu_custom_call.1']
    #allocation5 [shape = 'u8[65536]{0}', space=vmem, size = 0x10000, scoped, tag = 'input window, operand 1, single buffered']
    #allocation6 [shape = 's32[1]{0}', space=sflag, size = 0x4, scoped, tag = 'scoped memory for tpu_custom_call.1']
    #allocation7 [shape = 'u8[24576]{0}', space=vmem, size = 0x6000, scoped, tag = 'output window, operand 0, single buffered']
    %7 = vsyncpa [#allocation3], 0
    %8 = vsyncpa [#allocation6], 0
    %9 = vsyncpa [#allocation4], 0
    // Predicated region
    $region2: #{tpu_custom_call.1} parent=1 // pred_check
      _
    $region3: #{tpu_custom_call.1} parent=1 // pred_check_branch
      %11 = sbr.rel (0) target = $region5
    $region4: #{tpu_custom_call.1} parent=1 // pred_region
      %13 = vsyncadd [#allocation3], 0
      %s14 = sshll.u32 %s0, 4
      %s15 = int_to_ptr.hbm [resolvable:$true] %s14
      %s16 = sshll.u32 [#allocation2], 4
      %s17 = int_to_ptr.vmem [resolvable:$true] %s16
      %22 = dma.hbm_to_vmem [thread:$0]  %s15, 384, %s17, [#allocation3], 128, 128, 8
    $region5: #{tpu_custom_call.1} parent=1 // pred_fallthru
      _
    // Predicated region
    $region6: #{tpu_custom_call.1} parent=1 // pred_check
      _
    $region7: #{tpu_custom_call.1} parent=1 // pred_check_branch
      %24 = sbr.rel (0) target = $region9
    $region8: #{tpu_custom_call.1} parent=1 // pred_region
      %26 = vsyncadd [#allocation6], 0
      %s27 = sshll.u32 %s1, 4
      %s28 = int_to_ptr.hbm [resolvable:$true] %s27
      %s29 = sshll.u32 [#allocation5], 4
      %s30 = int_to_ptr.vmem [resolvable:$true] %s29
      %35 = dma.hbm_to_vmem [thread:$0]  %s28, 2048, %s30, [#allocation6], 256, 256, 16
    $region9: #{tpu_custom_call.1} parent=1 // pred_fallthru
      _
    // Predicated region
    $region10: #{tpu_custom_call.1} parent=1 // pred_check
      _
    $region11: #{tpu_custom_call.1} parent=1 // pred_check_branch
      %37 = sbr.rel (0) target = $region13
    $region12: #{tpu_custom_call.1} parent=1 // pred_region
      %39 = dma.done [#allocation3], 384
    $region13: #{tpu_custom_call.1} parent=1 // pred_fallthru
      _
    // Predicated region
    $region14: #{tpu_custom_call.1} parent=1 // pred_check
      _
    $region15: #{tpu_custom_call.1} parent=1 // pred_check_branch
      %41 = sbr.rel (0) target = $region17
    $region16: #{tpu_custom_call.1} parent=1 // pred_region
      %43 = dma.done [#allocation6], 2048
    $region17: #{tpu_custom_call.1} parent=1 // pred_fallthru
      _
    %v44 = vld [vmem:[#allocation2] sm:$0xff]
    %v45 = vld [vmem:[#allocation2 + $0x8] sm:$0xff]
    %v46 = vld [vmem:[#allocation2 + $0x10] sm:$0xf]
    %v47 = vld [vmem:[#allocation5] sm:$0xff]
    %v48 = vld [vmem:[#allocation5 + $0x8] sm:$0xff]
    %v49 = vld [vmem:[#allocation5 + $0x10] sm:$0xff]
    %v50 = vld [vmem:[#allocation5 + $0x18] sm:$0xff]
    %v51 = vld [vmem:[#allocation5 + $0x20] sm:$0xff]
    %v52 = vld [vmem:[#allocation5 + $0x28] sm:$0xff]
    %v53 = vld [vmem:[#allocation5 + $0x30] sm:$0xff]
    %v54 = vld [vmem:[#allocation5 + $0x38] sm:$0xff]
    %v55 = vld [vmem:[#allocation5 + $0x40] sm:$0xff]
    %v56 = vld [vmem:[#allocation5 + $0x48] sm:$0xff]
    %v57 = vld [vmem:[#allocation5 + $0x50] sm:$0xff]
    %v58 = vld [vmem:[#allocation5 + $0x58] sm:$0xff]
    %v59 = vld [vmem:[#allocation5 + $0x60] sm:$0xff]
    %v60 = vld [vmem:[#allocation5 + $0x68] sm:$0xff]
    %v61 = vld [vmem:[#allocation5 + $0x70] sm:$0xff]
    %v62 = vld [vmem:[#allocation5 + $0x78] sm:$0xff]
    %vm63 = vcmask 523264
    %v65 = vsel %vm63, %v44, 0
    %v68 = vsel %vm63, %v45, 0
    %v71 = vsel %vm63, %v46, 0
    %73 = vmatpush.msra.mxu0 0.0
    %74 = vmatpush.msra.mxu0 0.0
    %75 = vmatpush.msra.mxu0 0.0
    %76 = vmatpush.msra.mxu0 0.0
    %77 = vmatpush.msra.mxu0 0.0
    %78 = vmatpush.msra.mxu0 0.0
    %79 = vmatpush.msra.mxu0 0.0
    %80 = vmatpush.msra.mxu0 0.0
    %81 = vmatpush.msra.mxu0 %v61
    %82 = vmatpush.msra.mxu0 %v59
    %83 = vmatpush.msra.mxu0 %v57
    %84 = vmatpush.msra.mxu0 %v55
    %85 = vmatpush.msra.mxu0 %v53
    %86 = vmatpush.msra.mxu0 %v51
    %87 = vmatpush.msra.mxu0 %v49
    %88 = vmatpush.msra.mxu0 %v47
    %89 = vmatmul.f32.gmra.mxu0 %v65
    %v90 = vpop.f32.mrf.mxu0
    %v91 = vadd.f32 0.0, %v90
    %92 = vmatmul.f32.gmra.mxu0 %v68
    %v93 = vpop.f32.mrf.mxu0
    %v94 = vadd.f32 0.0, %v93
    %95 = vmatmul.f32.gmra.mxu0 %v71
    %v96 = vpop.f32.mrf.mxu0
    %v97 = vadd.f32 0.0, %v96
    %98 = vdwg.mxu0
    %99 = vmatpush.msra.mxu0 0.0
    %100 = vmatpush.msra.mxu0 0.0
    %101 = vmatpush.msra.mxu0 0.0
    %102 = vmatpush.msra.mxu0 0.0
    %103 = vmatpush.msra.mxu0 0.0
    %104 = vmatpush.msra.mxu0 0.0
    %105 = vmatpush.msra.mxu0 0.0
    %106 = vmatpush.msra.mxu0 0.0
    %107 = vmatpush.msra.mxu0 %v62
    %108 = vmatpush.msra.mxu0 %v60
    %109 = vmatpush.msra.mxu0 %v58
    %110 = vmatpush.msra.mxu0 %v56
    %111 = vmatpush.msra.mxu0 %v54
    %112 = vmatpush.msra.mxu0 %v52
    %113 = vmatpush.msra.mxu0 %v50
    %114 = vmatpush.msra.mxu0 %v48
    %115 = vmatmul.f32.gmra.mxu0 %v65
    %v116 = vpop.f32.mrf.mxu0
    %v117 = vadd.f32 0.0, %v116
    %118 = vmatmul.f32.gmra.mxu0 %v68
    %v119 = vpop.f32.mrf.mxu0
    %v120 = vadd.f32 0.0, %v119
    %121 = vmatmul.f32.gmra.mxu0 %v71
    %v122 = vpop.f32.mrf.mxu0
    %v123 = vadd.f32 0.0, %v122
    %124 = vdwg.mxu0
    %125 = vst [vmem:[#allocation7] sm:$0xff] %v91
    %126 = vst [vmem:[#allocation7 + $0x8] sm:$0xff] %v117
    %127 = vst [vmem:[#allocation7 + $0x10] sm:$0xff] %v94
    %128 = vst [vmem:[#allocation7 + $0x18] sm:$0xff] %v120
    %129 = vst [vmem:[#allocation7 + $0x20] sm:$0xf] %v97
    %130 = vst [vmem:[#allocation7 + $0x28] sm:$0xf] %v123
    // Predicated region
    $region18: #{tpu_custom_call.1} parent=1 // pred_check
      _
    $region19: #{tpu_custom_call.1} parent=1 // pred_check_branch
      %132 = sbr.rel (0) target = $region21
    $region20: #{tpu_custom_call.1} parent=1 // pred_region
      %134 = vsyncadd [#allocation4], 0
      %s135 = sshll.u32 [#allocation7], 4
      %s136 = int_to_ptr.vmem [resolvable:$true] %s135
      %s137 = sshll.u32 %s2, 4
      %s138 = int_to_ptr.hbm [resolvable:$true] %s137
      %143 = dma.vmem_to_hbm [thread:$0]  %s136, 768, %s138, [#allocation4], 256, 256, 16
    $region21: #{tpu_custom_call.1} parent=1 // pred_fallthru
      _
    // Predicated region
    $region22: #{tpu_custom_call.1} parent=1 // pred_check
      _
    $region23: #{tpu_custom_call.1} parent=1 // pred_check_branch
      %145 = sbr.rel (0) target = $region25
    $region24: #{tpu_custom_call.1} parent=1 // pred_region
      %147 = dma.done [#allocation4], 768
    $region25: #{tpu_custom_call.1} parent=1 // pred_fallthru
      _
    %148 = vsyncpa [#allocation3], 1
    %149 = vsyncpa [#allocation6], 1
    %150 = vsyncpa [#allocation4], 1

</llo_original>
